<compile_context>
chip_gen: v5e
topology: v5e:2x2
jax: 0.10.0
libtpu: 0.0.40
codegen_flags: <defaults>
</compile_context>

<pallas_src>
import functools

import jax
import jax.numpy as jnp
from jax.experimental import pallas as pl
from jax.experimental.pallas import tpu as pltpu


def _round_up(n, m):
    return pl.cdiv(n, m) * m


def gnosis_kernel(x_ref, w1_ref, b1_ref, w2_ref, b2_ref, w3_ref, b3_ref, o_ref):
    """One batch tile of the 3-layer MLP. Norms are pre-folded into w1/b1, w3/b3."""
    x = x_ref[...]

    # fc1 (+ folded input normalization) + tanh
    h1 = jnp.dot(x, w1_ref[...], preferred_element_type=jnp.float32) + b1_ref[...]
    a1 = jnp.tanh(h1).astype(w2_ref.dtype)      # tanh in f32; cast back for the MXU

    # fc2 + tanh
    h2 = jnp.dot(a1, w2_ref[...], preferred_element_type=jnp.float32) + b2_ref[...]
    a2 = jnp.tanh(h2).astype(w3_ref.dtype)

    # fc3 (+ folded output normalization)
    h3 = jnp.dot(a2, w3_ref[...], preferred_element_type=jnp.float32) + b3_ref[...]
    o_ref[...] = h3.astype(o_ref.dtype)


@functools.partial(jax.jit, static_argnames=("tile_b", "compute_dtype"))
def gnosis_forward(x, params, *, tile_b=2048, compute_dtype=jnp.float32):
    """x: (B, input_size) float32. params: dict of weights (see init_params).

    compute_dtype: dtype for x and the weight matrices (f32 or bf16). Biases and
    accumulation stay f32.
    """
    B, D = x.shape
    H2 = params["w1"].shape[1]
    H = params["w2"].shape[1]
    out_dim = params["w3"].shape[1]

    # --- Fold affine input/output normalizations into fc1 / fc3 (exact algebra). ---
    # (x*n + c) @ W1 + b1  ==  x @ (n[:,None]*W1) + (c @ W1 + b1)
    w1 = params["inp_normalizer"].reshape(-1, 1) * params["w1"]
    b1 = params["inp_bias"] @ params["w1"] + params["b1"]
    # (a @ W3 + b3)*m + d  ==  a @ (W3*m) + (b3*m + d)
    w3 = params["w3"] * params["out_normalizer"]
    b3 = params["b3"] * params["out_normalizer"] + params["out_bias"]
    w2, b2 = params["w2"], params["b2"]

    # --- Optional bf16 cast of the HBM-dominant streams (x + weight matrices). ---
    x_c = x.astype(compute_dtype)
    w1_c = w1.astype(compute_dtype)
    w2_c = w2.astype(compute_dtype)
    w3_c = w3.astype(compute_dtype)
    b1 = b1.astype(jnp.float32)
    b2 = b2.astype(jnp.float32)
    b3 = b3.astype(jnp.float32)

    # --- Batch tiling: multiple of 8 sublanes, padded batch divisible by the tile. ---
    tb = min(tile_b, _round_up(B, 8))
    tb = _round_up(tb, 8)
    Bp = _round_up(B, tb)
    if Bp != B:
        x_c = jnp.pad(x_c, ((0, Bp - B), (0, 0)))
    grid = (Bp // tb,)

    # Weights/biases: constant index_map -> stay resident in VMEM across grid steps.
    const2d = lambda i: (0, 0)
    in_specs = [
        pl.BlockSpec((tb, D), lambda i: (i, 0)),        # x tile (pipelined)
        pl.BlockSpec((D, H2), const2d),                 # w1
        pl.BlockSpec((1, H2), const2d),                 # b1
        pl.BlockSpec((H2, H), const2d),                 # w2
        pl.BlockSpec((1, H), const2d),                  # b2
        pl.BlockSpec((H, out_dim), const2d),            # w3
        pl.BlockSpec((1, out_dim), const2d),            # b3
    ]
    out_specs = pl.BlockSpec((tb, out_dim), lambda i: (i, 0))

    x_bytes = jnp.dtype(compute_dtype).itemsize
    w_bytes = (D * H2 + H2 * H + H * out_dim) * x_bytes + (H2 + H + out_dim) * 4
    cost = pl.CostEstimate(
        flops=2 * Bp * (D * H2 + H2 * H + H * out_dim),
        transcendentals=Bp * (H2 + H),
        bytes_accessed=Bp * D * x_bytes + Bp * out_dim * 4 + w_bytes,
    )

    out = pl.pallas_call(
        gnosis_kernel,
        out_shape=jax.ShapeDtypeStruct((Bp, out_dim), jnp.float32),
        grid=grid,
        in_specs=in_specs,
        out_specs=out_specs,
        compiler_params=pltpu.CompilerParams(
            dimension_semantics=("parallel",),
        ),
        cost_estimate=cost,
    )(x_c, w1_c, b1, w2_c, b2, w3_c, b3)

    return out[:B]


def init_params(key, input_size, hidden_size, out_dim=10):
    """Deterministic synthetic init matching nn.Linear shapes (stored as (in, out))."""
    ks = jax.random.split(key, 6)

    def linear(kw, kb, fan_in, fan_out):
        # PyTorch default init: U(-1/sqrt(fan_in), 1/sqrt(fan_in))
        bound = 1.0 / jnp.sqrt(jnp.float32(fan_in))
        w = jax.random.uniform(kw, (fan_in, fan_out), jnp.float32, -bound, bound)
        b = jax.random.uniform(kb, (1, fan_out), jnp.float32, -bound, bound)
        return w, b

    w1, b1 = linear(ks[0], ks[1], input_size, hidden_size * 2)
    w2, b2 = linear(ks[2], ks[3], hidden_size * 2, hidden_size)
    w3, b3 = linear(ks[4], ks[5], hidden_size, out_dim)

    return {
        "w1": w1, "b1": b1,
        "w2": w2, "b2": b2,
        "w3": w3, "b3": b3,
        # Module defaults: ones / zeros
        "inp_normalizer": jnp.ones((1, input_size), jnp.float32),
        "inp_bias": jnp.zeros((1, input_size), jnp.float32),
        "out_normalizer": jnp.ones((1, out_dim), jnp.float32),
        "out_bias": jnp.zeros((1, out_dim), jnp.float32),
    }


def gnosis_reference(x, p):
    """Pure-JAX reference for correctness check (matches the PyTorch forward)."""
    h = x * p["inp_normalizer"] + p["inp_bias"]
    a1 = jnp.tanh(h @ p["w1"] + p["b1"])
    a2 = jnp.tanh(a1 @ p["w2"] + p["b2"])
    return (a2 @ p["w3"] + p["b3"]) * p["out_normalizer"] + p["out_bias"]


if __name__ == "__main__":
    # TODO(synk): psf_model / tranform_fun branch not implemented (psf_model=None path only).
    input_size = 16
    hidden_size = 32
    batch = 2

    key = jax.random.PRNGKey(0)
    k_param, k_x = jax.random.split(key)

    params = init_params(k_param, input_size, hidden_size)
    x = jax.random.normal(k_x, (batch, input_size), dtype=jnp.float32)

    ref = gnosis_reference(x, params)

    # f32 path: bit-for-bit-ish match with the reference.
    out = jax.block_until_ready(gnosis_forward(x, params))
    assert out.shape == (batch, 10), out.shape
    assert jnp.allclose(out, ref, atol=1e-5, rtol=1e-5), "f32 mismatch vs reference"

    # bf16 path (bandwidth-optimized x/weight streams), looser tolerance.
    out_bf16 = jax.block_until_ready(
        gnosis_forward(x, params, compute_dtype=jnp.bfloat16))
    assert out_bf16.shape == (batch, 10), out_bf16.shape
    assert jnp.allclose(out_bf16, ref, atol=1e-1, rtol=1e-1), "bf16 mismatch vs reference"

    print("KERNEL_OK")
</pallas_src>

<mosaic_0001>
module attributes {stable_mosaic.version = 11 : i64} {
  func.func @gnosis_kernel(%arg0: i32, %arg1: memref<8x16xf32, #tpu.memory_space<vmem>>, %arg2: memref<16x64xf32, #tpu.memory_space<vmem>>, %arg3: memref<1x64xf32, #tpu.memory_space<vmem>>, %arg4: memref<64x32xf32, #tpu.memory_space<vmem>>, %arg5: memref<1x32xf32, #tpu.memory_space<vmem>>, %arg6: memref<32x10xf32, #tpu.memory_space<vmem>>, %arg7: memref<1x10xf32, #tpu.memory_space<vmem>>, %arg8: memref<8x10xf32, #tpu.memory_space<vmem>>) attributes {dimension_semantics = [#tpu.dimension_semantics<parallel>], iteration_bounds = array<i64: 1>, scalar_prefetch = 0 : i64, scratch_operands = 0 : i64, tpu.core_type = #tpu.core_type<tc>, window_params = [{transform_indices = @transform_0, window_bounds = array<i64: 8, 16>}, {pipeline_mode = #tpu.pipeline_mode<synchronous>, transform_indices = @transform_1, window_bounds = array<i64: 16, 64>}, {pipeline_mode = #tpu.pipeline_mode<synchronous>, transform_indices = @transform_2, window_bounds = array<i64: 1, 64>}, {pipeline_mode = #tpu.pipeline_mode<synchronous>, transform_indices = @transform_3, window_bounds = array<i64: 64, 32>}, {pipeline_mode = #tpu.pipeline_mode<synchronous>, transform_indices = @transform_4, window_bounds = array<i64: 1, 32>}, {pipeline_mode = #tpu.pipeline_mode<synchronous>, transform_indices = @transform_5, window_bounds = array<i64: 32, 10>}, {pipeline_mode = #tpu.pipeline_mode<synchronous>, transform_indices = @transform_6, window_bounds = array<i64: 1, 10>}, {transform_indices = @transform_7, window_bounds = array<i64: 8, 10>}]} {
    %c0 = arith.constant 0 : index
    %c0_0 = arith.constant 0 : index
    %0 = vector.load %arg1[%c0, %c0_0] : memref<8x16xf32, #tpu.memory_space<vmem>>, vector<8x16xf32>
    %c0_1 = arith.constant 0 : index
    %c0_2 = arith.constant 0 : index
    %1 = vector.load %arg2[%c0_1, %c0_2] : memref<16x64xf32, #tpu.memory_space<vmem>>, vector<16x64xf32>
    %cst = arith.constant dense<0.000000e+00> : vector<8x64xf32>
    %2 = tpu.matmul %0, %1, %cst {dimension_numbers = #tpu.dot_dimension_numbers<[1], [0], [0], [1], [0, 0, 1, 1], [], []>} : vector<8x16xf32>, vector<16x64xf32>, vector<8x64xf32> -> vector<8x64xf32>
    %c0_3 = arith.constant 0 : index
    %c0_4 = arith.constant 0 : index
    %3 = vector.load %arg3[%c0_3, %c0_4] : memref<1x64xf32, #tpu.memory_space<vmem>>, vector<1x64xf32>
    %4 = vector.broadcast %3 : vector<1x64xf32> to vector<8x64xf32>
    %5 = arith.addf %2, %4 : vector<8x64xf32>
    %6 = math.tanh %5 : vector<8x64xf32>
    %c0_5 = arith.constant 0 : index
    %c0_6 = arith.constant 0 : index
    %7 = vector.load %arg4[%c0_5, %c0_6] : memref<64x32xf32, #tpu.memory_space<vmem>>, vector<64x32xf32>
    %cst_7 = arith.constant dense<0.000000e+00> : vector<8x32xf32>
    %8 = tpu.matmul %6, %7, %cst_7 {dimension_numbers = #tpu.dot_dimension_numbers<[1], [0], [0], [1], [0, 0, 1, 1], [], []>} : vector<8x64xf32>, vector<64x32xf32>, vector<8x32xf32> -> vector<8x32xf32>
    %c0_8 = arith.constant 0 : index
    %c0_9 = arith.constant 0 : index
    %9 = vector.load %arg5[%c0_8, %c0_9] : memref<1x32xf32, #tpu.memory_space<vmem>>, vector<1x32xf32>
    %10 = vector.broadcast %9 : vector<1x32xf32> to vector<8x32xf32>
    %11 = arith.addf %8, %10 : vector<8x32xf32>
    %12 = math.tanh %11 : vector<8x32xf32>
    %c0_10 = arith.constant 0 : index
    %c0_11 = arith.constant 0 : index
    %13 = vector.load %arg6[%c0_10, %c0_11] : memref<32x10xf32, #tpu.memory_space<vmem>>, vector<32x10xf32>
    %cst_12 = arith.constant dense<0.000000e+00> : vector<8x10xf32>
    %14 = tpu.matmul %12, %13, %cst_12 {dimension_numbers = #tpu.dot_dimension_numbers<[1], [0], [0], [1], [0, 0, 1, 1], [], []>} : vector<8x32xf32>, vector<32x10xf32>, vector<8x10xf32> -> vector<8x10xf32>
    %c0_13 = arith.constant 0 : index
    %c0_14 = arith.constant 0 : index
    %15 = vector.load %arg7[%c0_13, %c0_14] : memref<1x10xf32, #tpu.memory_space<vmem>>, vector<1x10xf32>
    %16 = vector.broadcast %15 : vector<1x10xf32> to vector<8x10xf32>
    %17 = arith.addf %14, %16 : vector<8x10xf32>
    %c0_15 = arith.constant 0 : index
    %c0_16 = arith.constant 0 : index
    %18 = vector.load %arg8[%c0_15, %c0_16] : memref<8x10xf32, #tpu.memory_space<vmem>>, vector<8x10xf32>
    tpu.vector_store %arg8[%c0_15, %c0_16], %17 {strides = array<i32>} : memref<8x10xf32, #tpu.memory_space<vmem>>, vector<8x10xf32>,
    return
  }
  func.func @transform_0(%arg0: i32) -> (i32, i32) {
    %c0_i32 = arith.constant 0 : i32
    %c0_i32_0 = arith.constant 0 : i32
    return %arg0, %c0_i32 : i32, i32
  }
  func.func @transform_1(%arg0: i32) -> (i32, i32) {
    %c0_i32 = arith.constant 0 : i32
    %c0_i32_0 = arith.constant 0 : i32
    %c0_i32_1 = arith.constant 0 : i32
    return %c0_i32, %c0_i32_0 : i32, i32
  }
  func.func @transform_2(%arg0: i32) -> (i32, i32) {
    %c0_i32 = arith.constant 0 : i32
    %c0_i32_0 = arith.constant 0 : i32
    %c0_i32_1 = arith.constant 0 : i32
    return %c0_i32, %c0_i32_0 : i32, i32
  }
  func.func @transform_3(%arg0: i32) -> (i32, i32) {
    %c0_i32 = arith.constant 0 : i32
    %c0_i32_0 = arith.constant 0 : i32
    %c0_i32_1 = arith.constant 0 : i32
    return %c0_i32, %c0_i32_0 : i32, i32
  }
  func.func @transform_4(%arg0: i32) -> (i32, i32) {
    %c0_i32 = arith.constant 0 : i32
    %c0_i32_0 = arith.constant 0 : i32
    %c0_i32_1 = arith.constant 0 : i32
    return %c0_i32, %c0_i32_0 : i32, i32
  }
  func.func @transform_5(%arg0: i32) -> (i32, i32) {
    %c0_i32 = arith.constant 0 : i32
    %c0_i32_0 = arith.constant 0 : i32
    %c0_i32_1 = arith.constant 0 : i32
    return %c0_i32, %c0_i32_0 : i32, i32
  }
  func.func @transform_6(%arg0: i32) -> (i32, i32) {
    %c0_i32 = arith.constant 0 : i32
    %c0_i32_0 = arith.constant 0 : i32
    %c0_i32_1 = arith.constant 0 : i32
    return %c0_i32, %c0_i32_0 : i32, i32
  }
  func.func @transform_7(%arg0: i32) -> (i32, i32) {
    %c0_i32 = arith.constant 0 : i32
    %c0_i32_0 = arith.constant 0 : i32
    return %arg0, %c0_i32 : i32, i32
  }
}

</mosaic_0001>

<llo_original>
// kernel: gnosis_forward.1
$region0: #{gnosis_forward.1}
  #allocation0 [shape = 'u32[]', space=smem, size = 0x4, offset = 0x4, fixed_abs, tag = 'smem constant byte address 0x4 - core index']
  #allocation1 [shape = 'u32[72,128]{1,0:T(1,128)}', space=vmem, size = 0x9000, scoped, tag = 'internal scratch']
  %s0 = inlined_call_operand.vmem [shape: f32[8,16], index: 0, kind: input, shape index: {}]
  %s1 = inlined_call_operand.vmem [shape: f32[16,64], index: 1, kind: input, shape index: {}]
  %s2 = inlined_call_operand.vmem [shape: f32[1,64], index: 2, kind: input, shape index: {}]
  %s3 = inlined_call_operand.vmem [shape: f32[64,32], index: 3, kind: input, shape index: {}]
  %s4 = inlined_call_operand.vmem [shape: f32[1,32], index: 4, kind: input, shape index: {}]
  %s5 = inlined_call_operand.vmem [shape: f32[32,10], index: 5, kind: input, shape index: {}]
  %s6 = inlined_call_operand.vmem [shape: f32[1,10], index: 6, kind: input, shape index: {}]
  %s7 = inlined_call_operand.vmem [shape: f32[8,10], index: 7, kind: output, shape index: {}]
  %s8 = sld [smem:[#allocation0]]
  $region38: #{gnosis_forward.1} parent=0
    _
  %s10 = ssub.s32 1, %s8
  %s11 = scalar_select 0, %s10, %s8
  // Predicated region
  $region2: #{gnosis_forward.1} parent=0 // pred_check
    _
  $region3: #{gnosis_forward.1} parent=0 // pred_check_branch
    %13 = sbr.rel (0) target = $region5
  $region4: #{gnosis_forward.1} parent=0 // pred_region
    _
  $region5: #{gnosis_forward.1} parent=0 // pred_fallthru
    _
  // Predicated region
  $region6: #{gnosis_forward.1} parent=0 // pred_check
    _
  $region7: #{gnosis_forward.1} parent=0 // pred_check_branch
    %15 = sbr.rel (0) target = $region9
  $region8: #{gnosis_forward.1} parent=0 // pred_region
    _
  $region9: #{gnosis_forward.1} parent=0 // pred_fallthru
    _
  // Predicated region
  $region10: #{gnosis_forward.1} parent=0 // pred_check
    _
  $region11: #{gnosis_forward.1} parent=0 // pred_check_branch
    %17 = sbr.rel (0) target = $region13
  $region12: #{gnosis_forward.1} parent=0 // pred_region
    _
  $region13: #{gnosis_forward.1} parent=0 // pred_fallthru
    _
  // Predicated region
  $region14: #{gnosis_forward.1} parent=0 // pred_check
    _
  $region15: #{gnosis_forward.1} parent=0 // pred_check_branch
    %19 = sbr.rel (0) target = $region17
  $region16: #{gnosis_forward.1} parent=0 // pred_region
    _
  $region17: #{gnosis_forward.1} parent=0 // pred_fallthru
    _
  // Predicated region
  $region18: #{gnosis_forward.1} parent=0 // pred_check
    _
  $region19: #{gnosis_forward.1} parent=0 // pred_check_branch
    %21 = sbr.rel (0) target = $region21
  $region20: #{gnosis_forward.1} parent=0 // pred_region
    _
  $region21: #{gnosis_forward.1} parent=0 // pred_fallthru
    _
  // Predicated region
  $region22: #{gnosis_forward.1} parent=0 // pred_check
    _
  $region23: #{gnosis_forward.1} parent=0 // pred_check_branch
    %23 = sbr.rel (0) target = $region25
  $region24: #{gnosis_forward.1} parent=0 // pred_region
    _
  $region25: #{gnosis_forward.1} parent=0 // pred_fallthru
    _
  // Predicated region
  $region26: #{gnosis_forward.1} parent=0 // pred_check
    _
  $region27: #{gnosis_forward.1} parent=0 // pred_check_branch
    %25 = sbr.rel (0) target = $region29
  $region28: #{gnosis_forward.1} parent=0 // pred_region
    _
  $region29: #{gnosis_forward.1} parent=0 // pred_fallthru
    _
  %v26 = vld [vmem:[%s0] sm:$0xff]
  %v27 = vld [vmem:[%s1] sm:$0xff]
  %v28 = vld [vmem:[%s1 + $0x8] sm:$0xff]
  %v29 = vld [vmem:[%s2] sm:$0x1]
  %v31 = vperm.slane %v29, 0
  %vm33 = vcmask 130048
  %v35 = vsel %vm33, %v26, 0
  %37 = vmatpush.msra.mxu0 0.0
  %38 = vmatpush.msra.mxu0 0.0
  %39 = vmatpush.msra.mxu0 0.0
  %40 = vmatpush.msra.mxu0 0.0
  %41 = vmatpush.msra.mxu0 0.0
  %42 = vmatpush.msra.mxu0 0.0
  %43 = vmatpush.msra.mxu0 0.0
  %44 = vmatpush.msra.mxu0 0.0
  %45 = vmatpush.msra.mxu0 0.0
  %46 = vmatpush.msra.mxu0 0.0
  %47 = vmatpush.msra.mxu0 0.0
  %48 = vmatpush.msra.mxu0 0.0
  %49 = vmatpush.msra.mxu0 0.0
  %50 = vmatpush.msra.mxu0 0.0
  %51 = vmatpush.msra.mxu0 %v28
  %52 = vmatpush.msra.mxu0 %v27
  %53 = vmatmul.f32.gmra.mxu0 %v35
  %v54 = vpop.f32.mrf.mxu0
  %v55 = vadd.f32 %v31, %v54
  %56 = vdwg.mxu0
  %v57 = vtanh.pop %v55
  %v58 = vld [vmem:[%s3] sm:$0xff]
  %v59 = vld [vmem:[%s3 + $0x8] sm:$0xff]
  %v60 = vld [vmem:[%s3 + $0x10] sm:$0xff]
  %v61 = vld [vmem:[%s3 + $0x18] sm:$0xff]
  %v62 = vld [vmem:[%s3 + $0x20] sm:$0xff]
  %v63 = vld [vmem:[%s3 + $0x28] sm:$0xff]
  %v64 = vld [vmem:[%s3 + $0x30] sm:$0xff]
  %v65 = vld [vmem:[%s3 + $0x38] sm:$0xff]
  %v66 = vld [vmem:[%s4] sm:$0x1]
  %v68 = vperm.slane %v66, 0
  %vm70 = vcmask 523264
  %v72 = vsel %vm70, %v57, 0
  %74 = vmatpush.msra.mxu0 0.0
  %75 = vmatpush.msra.mxu0 0.0
  %76 = vmatpush.msra.mxu0 0.0
  %77 = vmatpush.msra.mxu0 0.0
  %78 = vmatpush.msra.mxu0 0.0
  %79 = vmatpush.msra.mxu0 0.0
  %80 = vmatpush.msra.mxu0 0.0
  %81 = vmatpush.msra.mxu0 0.0
  %82 = vmatpush.msra.mxu0 %v65
  %83 = vmatpush.msra.mxu0 %v64
  %84 = vmatpush.msra.mxu0 %v63
  %85 = vmatpush.msra.mxu0 %v62
  %86 = vmatpush.msra.mxu0 %v61
  %87 = vmatpush.msra.mxu0 %v60
  %88 = vmatpush.msra.mxu0 %v59
  %89 = vmatpush.msra.mxu0 %v58
  %90 = vmatmul.f32.gmra.mxu0 %v72
  %v91 = vpop.f32.mrf.mxu0
  %v92 = vadd.f32 %v68, %v91
  %93 = vdwg.mxu0
  %v94 = vtanh.pop %v92
  %v95 = vld [vmem:[%s5] sm:$0xff]
  %v96 = vld [vmem:[%s5 + $0x8] sm:$0xff]
  %v97 = vld [vmem:[%s5 + $0x10] sm:$0xff]
  %v98 = vld [vmem:[%s5 + $0x18] sm:$0xff]
  %v99 = vld [vmem:[%s6] sm:$0x1]
  %v101 = vperm.slane %v99, 0
  %vm103 = vcmask 261120
  %v105 = vsel %vm103, %v94, 0
  %107 = vmatpush.msra.mxu0 0.0
  %108 = vmatpush.msra.mxu0 0.0
  %109 = vmatpush.msra.mxu0 0.0
  %110 = vmatpush.msra.mxu0 0.0
  %111 = vmatpush.msra.mxu0 0.0
  %112 = vmatpush.msra.mxu0 0.0
  %113 = vmatpush.msra.mxu0 0.0
  %114 = vmatpush.msra.mxu0 0.0
  %115 = vmatpush.msra.mxu0 0.0
  %116 = vmatpush.msra.mxu0 0.0
  %117 = vmatpush.msra.mxu0 0.0
  %118 = vmatpush.msra.mxu0 0.0
  %119 = vmatpush.msra.mxu0 %v98
  %120 = vmatpush.msra.mxu0 %v97
  %121 = vmatpush.msra.mxu0 %v96
  %122 = vmatpush.msra.mxu0 %v95
  %123 = vmatmul.f32.gmra.mxu0 %v105
  %v124 = vpop.f32.mrf.mxu0
  %v125 = vadd.f32 %v101, %v124
  %126 = vdwg.mxu0
  %vm127 = vcmask 80896
  %128 = vst.msk [vmem:[%s7] sm:$0xff] %vm127, %v125
  // Predicated region
  $region30: #{gnosis_forward.1} parent=0 // pred_check
    _
  $region31: #{gnosis_forward.1} parent=0 // pred_check_branch
    %130 = sbr.rel (0) target = $region33
  $region32: #{gnosis_forward.1} parent=0 // pred_region
    _
  $region33: #{gnosis_forward.1} parent=0 // pred_fallthru
    _
  // Predicated region
  $region34: #{gnosis_forward.1} parent=0 // pred_check
    _
  $region35: #{gnosis_forward.1} parent=0 // pred_check_branch
    %132 = sbr.rel (0) target = $region37
  $region36: #{gnosis_forward.1} parent=0 // pred_region
    _
  $region37: #{gnosis_forward.1} parent=0 // pred_fallthru
    _

</llo_original>
